<compile_context>
chip_gen: v7x
topology: tpu7x:2x2x1
jax: 0.10.0
libtpu: 0.0.40
codegen_flags: <defaults>
</compile_context>

<pallas_src>
import jax
import jax.numpy as jnp
from jax.experimental import pallas as pl
from jax.experimental.pallas import tpu as pltpu


HIDDEN = 40
IN_FEATURES = 198


def _round_up(n, m):
    return ((n + m - 1) // m) * m


def td_model_kernel(x_ref, w1_ref, b1_ref, w2_ref, b2_ref, out_ref):
    # x_ref : (TB, 198) f32   (streamed, double-buffered per grid step)
    # w1_ref: (198, 40) bf16  (VMEM-resident across the grid)
    # b1_ref: (1, 40)   f32   (VMEM-resident)
    # w2_ref: (1, 40)   f32   (torch Linear(40,1).weight row, VMEM-resident)
    # b2_ref: (1,)      f32   (SMEM scalar)
    # out_ref: (TB, 1)  f32

    # Layer 1 on the MXU: cast the streamed f32 tile to bf16 on the VPU (cheap,
    # overlapped with the next tile's DMA), accumulate in f32.
    x_bf16 = x_ref[...].astype(jnp.bfloat16)
    z1 = jnp.dot(x_bf16, w1_ref[...], preferred_element_type=jnp.float32)
    h = jax.nn.sigmoid(z1 + b1_ref[...])

    # Layer 2 (40 -> 1): VPU multiply + XLU lane reduce instead of a 1-column matmul.
    z2 = jnp.sum(h * w2_ref[...], axis=-1, keepdims=True) + b2_ref[0]
    out_ref[...] = jax.nn.sigmoid(z2)


def td_model_forward(x, w1_t, b1, w2_row, b2, *, block_b=2048):
    """Fused forward pass.

    x      : (B, 198) f32
    w1_t   : (198, 40) f32   (torch Linear(198,40).weight transposed)
    b1     : (40,)     f32
    w2_row : (1, 40)   f32   (torch Linear(40,1).weight as-is)
    b2     : (1,)      f32
    returns: (B, 1)    f32
    """
    B, F = x.shape
    assert F == IN_FEATURES

    # Batch tile: multiple of 8 (f32 sublane), up to block_b rows.
    tb = min(block_b, _round_up(B, 8))
    grid_b = pl.cdiv(B, tb)
    b_pad = grid_b * tb

    # Only pad the batch if it does not divide the tile (rare / small copy);
    # the feature dim needs no padding since the x block spans all 198 lanes.
    x_in = x if b_pad == B else jnp.pad(x, ((0, b_pad - B), (0, 0)))

    # Small resident operands: cast w1 to bf16 once (31 KB), keep biases f32.
    w1_bf = w1_t.astype(jnp.bfloat16)
    b1_2d = b1.reshape(1, HIDDEN).astype(jnp.float32)
    w2_2d = w2_row.reshape(1, HIDDEN).astype(jnp.float32)
    b2_1d = b2.reshape(1).astype(jnp.float32)

    out = pl.pallas_call(
        td_model_kernel,
        out_shape=jax.ShapeDtypeStruct((b_pad, 1), jnp.float32),
        grid=(grid_b,),
        in_specs=[
            pl.BlockSpec((tb, F), lambda i: (i, 0)),             # x: streamed tiles
            pl.BlockSpec((F, HIDDEN), lambda i: (0, 0)),         # w1: VMEM-resident
            pl.BlockSpec((1, HIDDEN), lambda i: (0, 0)),         # b1: VMEM-resident
            pl.BlockSpec((1, HIDDEN), lambda i: (0, 0)),         # w2 row: resident
            pl.BlockSpec(memory_space=pltpu.MemorySpace.SMEM),   # b2: SMEM scalar
        ],
        out_specs=pl.BlockSpec((tb, 1), lambda i: (i, 0)),
        compiler_params=pltpu.CompilerParams(
            dimension_semantics=("parallel",),  # batch tiles are independent
        ),
    )(x_in, w1_bf, b1_2d, w2_2d, b2_1d)

    return out if b_pad == B else out[:B]


def init_params(key):
    """Deterministic init mirroring nn.Linear default U[-1/sqrt(fan_in), 1/sqrt(fan_in)]."""
    k1, k2, k3, k4 = jax.random.split(key, 4)
    lim1 = 1.0 / jnp.sqrt(float(IN_FEATURES))
    lim2 = 1.0 / jnp.sqrt(float(HIDDEN))
    w1_t = jax.random.uniform(k1, (IN_FEATURES, HIDDEN), jnp.float32, -lim1, lim1)
    b1 = jax.random.uniform(k2, (HIDDEN,), jnp.float32, -lim1, lim1)
    w2_row = jax.random.uniform(k3, (1, HIDDEN), jnp.float32, -lim2, lim2)
    b2 = jax.random.uniform(k4, (1,), jnp.float32, -lim2, lim2)
    return w1_t, b1, w2_row, b2


def reference_forward(x, w1_t, b1, w2_row, b2):
    h = jax.nn.sigmoid(x @ w1_t + b1[None, :])
    return jax.nn.sigmoid(h @ w2_row.T + b2[None, :])


if __name__ == "__main__":
    key = jax.random.PRNGKey(0)
    kx, kx2, kp = jax.random.split(key, 3)
    w1_t, b1, w2_row, b2 = init_params(kp)

    # Small batch of backgammon board encodings (single tile).
    B = 8
    x = jax.random.uniform(kx, (B, IN_FEATURES), jnp.float32, 0.0, 1.0)
    out = jax.block_until_ready(td_model_forward(x, w1_t, b1, w2_row, b2))
    ref = reference_forward(x, w1_t, b1, w2_row, b2)
    assert out.shape == (B, 1), out.shape
    # Layer-1 matmul operands are bf16 in the kernel -> loosened tolerance.
    assert jnp.allclose(out, ref, atol=1e-2, rtol=1e-2), "mismatch vs reference (B=8)"

    # Multi-tile + batch-remainder path (grid > 1, padded last tile).
    B2 = 50
    x2 = jax.random.uniform(kx2, (B2, IN_FEATURES), jnp.float32, 0.0, 1.0)
    out2 = jax.block_until_ready(td_model_forward(x2, w1_t, b1, w2_row, b2, block_b=16))
    ref2 = reference_forward(x2, w1_t, b1, w2_row, b2)
    assert out2.shape == (B2, 1), out2.shape
    assert jnp.allclose(out2, ref2, atol=1e-2, rtol=1e-2), "mismatch vs reference (B=50)"

    print("KERNEL_OK")
</pallas_src>

<mosaic_0001>
module attributes {stable_mosaic.version = 11 : i64} {
  func.func @td_model_kernel(%arg0: i32, %arg1: memref<8x198xf32, #tpu.memory_space<vmem>>, %arg2: memref<198x40xbf16, #tpu.memory_space<vmem>>, %arg3: memref<1x40xf32, #tpu.memory_space<vmem>>, %arg4: memref<1x40xf32, #tpu.memory_space<vmem>>, %arg5: memref<1xf32, #tpu.memory_space<smem>>, %arg6: memref<8x1xf32, #tpu.memory_space<vmem>>) attributes {dimension_semantics = [#tpu.dimension_semantics<parallel>], iteration_bounds = array<i64: 1>, scalar_prefetch = 0 : i64, scratch_operands = 0 : i64, tpu.core_type = #tpu.core_type<tc>, window_params = [{transform_indices = @transform_0, window_bounds = array<i64: 8, 198>}, {pipeline_mode = #tpu.pipeline_mode<synchronous>, transform_indices = @transform_1, window_bounds = array<i64: 198, 40>}, {pipeline_mode = #tpu.pipeline_mode<synchronous>, transform_indices = @transform_2, window_bounds = array<i64: 1, 40>}, {pipeline_mode = #tpu.pipeline_mode<synchronous>, transform_indices = @transform_3, window_bounds = array<i64: 1, 40>}, {transform_indices = @transform_4, window_bounds = array<i64: 1>}, {transform_indices = @transform_5, window_bounds = array<i64: 8, 1>}]} {
    %c0 = arith.constant 0 : index
    %c0_0 = arith.constant 0 : index
    %0 = vector.load %arg1[%c0, %c0_0] : memref<8x198xf32, #tpu.memory_space<vmem>>, vector<8x198xf32>
    %1 = arith.truncf %0 : vector<8x198xf32> to vector<8x198xbf16>
    %c0_1 = arith.constant 0 : index
    %c0_2 = arith.constant 0 : index
    %2 = vector.load %arg2[%c0_1, %c0_2] : memref<198x40xbf16, #tpu.memory_space<vmem>>, vector<198x40xbf16>
    %cst = arith.constant dense<0.000000e+00> : vector<8x40xf32>
    %3 = tpu.matmul %1, %2, %cst {dimension_numbers = #tpu.dot_dimension_numbers<[1], [0], [0], [1], [0, 0, 1, 1], [], []>} : vector<8x198xbf16>, vector<198x40xbf16>, vector<8x40xf32> -> vector<8x40xf32>
    %c0_3 = arith.constant 0 : index
    %c0_4 = arith.constant 0 : index
    %4 = vector.load %arg3[%c0_3, %c0_4] : memref<1x40xf32, #tpu.memory_space<vmem>>, vector<1x40xf32>
    %5 = vector.broadcast %4 : vector<1x40xf32> to vector<8x40xf32>
    %6 = arith.addf %3, %5 : vector<8x40xf32>
    %7 = arith.negf %6 : vector<8x40xf32>
    %8 = math.exp %7 : vector<8x40xf32>
    %cst_5 = arith.constant 1.000000e+00 : f32
    %9 = vector.broadcast %cst_5 : f32 to vector<8x40xf32>
    %10 = arith.addf %9, %8 : vector<8x40xf32>
    %11 = arith.divf %9, %10 : vector<8x40xf32>
    %c0_6 = arith.constant 0 : index
    %c0_7 = arith.constant 0 : index
    %12 = vector.load %arg4[%c0_6, %c0_7] : memref<1x40xf32, #tpu.memory_space<vmem>>, vector<1x40xf32>
    %13 = vector.broadcast %12 : vector<1x40xf32> to vector<8x40xf32>
    %14 = arith.mulf %11, %13 : vector<8x40xf32>
    %cst_8 = arith.constant dense<0.000000e+00> : vector<8xf32>
    %15 = vector.multi_reduction <add>, %14, %cst_8 [1] : vector<8x40xf32> to vector<8xf32>
    %16 = vector.shape_cast %15 : vector<8xf32> to vector<8x1xf32>
    %c0_9 = arith.constant 0 : index
    %17 = memref.load %arg5[%c0_9] : memref<1xf32, #tpu.memory_space<smem>>
    %18 = vector.broadcast %17 : f32 to vector<8x1xf32>
    %19 = arith.addf %16, %18 : vector<8x1xf32>
    %20 = arith.negf %19 : vector<8x1xf32>
    %21 = math.exp %20 : vector<8x1xf32>
    %cst_10 = arith.constant 1.000000e+00 : f32
    %22 = vector.broadcast %cst_10 : f32 to vector<8x1xf32>
    %23 = arith.addf %22, %21 : vector<8x1xf32>
    %24 = arith.divf %22, %23 : vector<8x1xf32>
    %c0_11 = arith.constant 0 : index
    %c0_12 = arith.constant 0 : index
    %25 = vector.load %arg6[%c0_11, %c0_12] : memref<8x1xf32, #tpu.memory_space<vmem>>, vector<8x1xf32>
    tpu.vector_store %arg6[%c0_11, %c0_12], %24 {strides = array<i32>} : memref<8x1xf32, #tpu.memory_space<vmem>>, vector<8x1xf32>,
    return
  }
  func.func @transform_0(%arg0: i32) -> (i32, i32) {
    %c0_i32 = arith.constant 0 : i32
    %c0_i32_0 = arith.constant 0 : i32
    return %arg0, %c0_i32 : i32, i32
  }
  func.func @transform_1(%arg0: i32) -> (i32, i32) {
    %c0_i32 = arith.constant 0 : i32
    %c0_i32_0 = arith.constant 0 : i32
    %c0_i32_1 = arith.constant 0 : i32
    return %c0_i32, %c0_i32_0 : i32, i32
  }
  func.func @transform_2(%arg0: i32) -> (i32, i32) {
    %c0_i32 = arith.constant 0 : i32
    %c0_i32_0 = arith.constant 0 : i32
    %c0_i32_1 = arith.constant 0 : i32
    return %c0_i32, %c0_i32_0 : i32, i32
  }
  func.func @transform_3(%arg0: i32) -> (i32, i32) {
    %c0_i32 = arith.constant 0 : i32
    %c0_i32_0 = arith.constant 0 : i32
    %c0_i32_1 = arith.constant 0 : i32
    return %c0_i32, %c0_i32_0 : i32, i32
  }
  func.func @transform_4(%arg0: i32) -> i32 {
    %c0_i32 = arith.constant 0 : i32
    %c0_i32_0 = arith.constant 0 : i32
    return %c0_i32 : i32
  }
  func.func @transform_5(%arg0: i32) -> (i32, i32) {
    %c0_i32 = arith.constant 0 : i32
    %c0_i32_0 = arith.constant 0 : i32
    return %arg0, %c0_i32 : i32, i32
  }
}

</mosaic_0001>

<llo_original>
// kernel: tpu_custom_call.1
$region0: #{tpu_custom_call.1}
  #allocation0 [shape = 'u32[]', space=smem, size = 0x4, offset = 0x4, fixed_abs, tag = 'smem constant byte address 0x4 - core index']
  #allocation1 [shape = 'u32[144,128]{1,0:T(1,128)}', space=vmem, size = 0x12000, scoped, tag = 'internal scratch']
  #allocation2 [shape = 'f32[1]{0:T(128)S(6)}', space=smem, size = 0x200, scoped, tag = 'scoped memory for tpu_custom_call.1']
  %s0 = inlined_call_operand.vmem [shape: f32[8,198], index: 0, kind: input, shape index: {}]
  %s1 = inlined_call_operand.vmem [shape: bf16[198,40], index: 1, kind: input, shape index: {}]
  %s2 = inlined_call_operand.vmem [shape: f32[1,40], index: 2, kind: input, shape index: {}]
  %s3 = inlined_call_operand.vmem [shape: f32[1,40], index: 3, kind: input, shape index: {}]
  %s4 = inlined_call_operand.<no memory space> [shape: f32[1], index: 4, kind: input, shape index: {}]
  %s5 = inlined_call_operand.vmem [shape: f32[8,1], index: 5, kind: output, shape index: {}]
  %s6 = sld [smem:[#allocation0]]
  $region30: #{tpu_custom_call.1} parent=0
    _
  %s8 = ssub.s32 1, %s6
  %s9 = scalar_select 0, %s8, %s6
  %10 = sst [smem:[#allocation2]] %s4
  // Predicated region
  $region2: #{tpu_custom_call.1} parent=0 // pred_check
    _
  $region3: #{tpu_custom_call.1} parent=0 // pred_check_branch
    %12 = sbr.rel (0) target = $region5
  $region4: #{tpu_custom_call.1} parent=0 // pred_region
    _
  $region5: #{tpu_custom_call.1} parent=0 // pred_fallthru
    _
  // Predicated region
  $region6: #{tpu_custom_call.1} parent=0 // pred_check
    _
  $region7: #{tpu_custom_call.1} parent=0 // pred_check_branch
    %14 = sbr.rel (0) target = $region9
  $region8: #{tpu_custom_call.1} parent=0 // pred_region
    _
  $region9: #{tpu_custom_call.1} parent=0 // pred_fallthru
    _
  // Predicated region
  $region10: #{tpu_custom_call.1} parent=0 // pred_check
    _
  $region11: #{tpu_custom_call.1} parent=0 // pred_check_branch
    %16 = sbr.rel (0) target = $region13
  $region12: #{tpu_custom_call.1} parent=0 // pred_region
    _
  $region13: #{tpu_custom_call.1} parent=0 // pred_fallthru
    _
  // Predicated region
  $region14: #{tpu_custom_call.1} parent=0 // pred_check
    _
  $region15: #{tpu_custom_call.1} parent=0 // pred_check_branch
    %18 = sbr.rel (0) target = $region17
  $region16: #{tpu_custom_call.1} parent=0 // pred_region
    _
  $region17: #{tpu_custom_call.1} parent=0 // pred_fallthru
    _
  // Predicated region
  $region18: #{tpu_custom_call.1} parent=0 // pred_check
    _
  $region19: #{tpu_custom_call.1} parent=0 // pred_check_branch
    %20 = sbr.rel (0) target = $region21
  $region20: #{tpu_custom_call.1} parent=0 // pred_region
    _
  $region21: #{tpu_custom_call.1} parent=0 // pred_fallthru
    _
  %v22 = vld [vmem:[%s0] sm:$0xff]
  %v23 = vld [vmem:[%s0 + $0x8] sm:$0xff]
  %v24 = vpack.c.bf16 %v22, %v22
  %v25 = vpack.c.bf16 %v23, %v23
  %v26 = vld [vmem:[%s1] sm:$0xf]
  %v27 = vld [vmem:[%s1 + $0x4] sm:$0xf]
  %v28 = vld [vmem:[%s1 + $0x8] sm:$0xf]
  %v29 = vld [vmem:[%s1 + $0xc] sm:$0xf]
  %v30 = vld [vmem:[%s1 + $0x10] sm:$0xf]
  %v31 = vld [vmem:[%s1 + $0x14] sm:$0xf]
  %v32 = vld [vmem:[%s1 + $0x18] sm:$0xf]
  %v33 = vld [vmem:[%s1 + $0x1c] sm:$0xf]
  %v34 = vld [vmem:[%s1 + $0x20] sm:$0xf]
  %v35 = vld [vmem:[%s1 + $0x24] sm:$0xf]
  %v36 = vld [vmem:[%s1 + $0x28] sm:$0xf]
  %v37 = vld [vmem:[%s1 + $0x2c] sm:$0xf]
  %v38 = vld [vmem:[%s1 + $0x30] sm:$0xf]
  %v39 = vld [vmem:[%s1 + $0x34] sm:$0xf]
  %v40 = vld [vmem:[%s1 + $0x38] sm:$0xf]
  %v41 = vld [vmem:[%s1 + $0x3c] sm:$0xf]
  %v42 = vld [vmem:[%s1 + $0x40] sm:$0xf]
  %v43 = vld [vmem:[%s1 + $0x44] sm:$0xf]
  %v44 = vld [vmem:[%s1 + $0x48] sm:$0xf]
  %v45 = vld [vmem:[%s1 + $0x4c] sm:$0xf]
  %v46 = vld [vmem:[%s1 + $0x50] sm:$0xf]
  %v47 = vld [vmem:[%s1 + $0x54] sm:$0xf]
  %v48 = vld [vmem:[%s1 + $0x58] sm:$0xf]
  %v49 = vld [vmem:[%s1 + $0x5c] sm:$0xf]
  %v50 = vld [vmem:[%s1 + $0x60] sm:$0x7]
  %v51 = vld [vmem:[%s2] sm:$0x1]
  %v53 = vlaneseq
  %v54 = vshrl.u32 %v53, 7
  %v55 = vsub.s32 0, %v54
  %v56 = vrot.slane %v51, %v55
  %v83 = vunpack.c.l.b16 %v26
  %v84 = vunpack.c.l.b16 %v27
  %v85 = vunpack.c.l.b16 %v28
  %v86 = vunpack.c.l.b16 %v29
  %v87 = vunpack.c.l.b16 %v30
  %v88 = vunpack.c.l.b16 %v31
  %v89 = vunpack.c.l.b16 %v32
  %v90 = vunpack.c.l.b16 %v33
  %v91 = vunpack.c.l.b16 %v34
  %v92 = vunpack.c.l.b16 %v35
  %v93 = vunpack.c.l.b16 %v36
  %v94 = vunpack.c.l.b16 %v37
  %v95 = vunpack.c.l.b16 %v38
  %v96 = vunpack.c.l.b16 %v39
  %v97 = vunpack.c.l.b16 %v40
  %v98 = vunpack.c.l.b16 %v41
  %v99 = vunpack.c.l.b16 %v42
  %v100 = vunpack.c.l.b16 %v43
  %v101 = vunpack.c.l.b16 %v44
  %v102 = vunpack.c.l.b16 %v45
  %v103 = vunpack.c.l.b16 %v46
  %v104 = vunpack.c.l.b16 %v47
  %v105 = vunpack.c.l.b16 %v48
  %v106 = vunpack.c.l.b16 %v49
  %v107 = vunpack.c.l.b16 %v50
  %v108 = vpack.c.b16 %v84, %v83
  %v109 = vpack.c.b16 %v86, %v85
  %v110 = vpack.c.b16 %v88, %v87
  %v111 = vpack.c.b16 %v90, %v89
  %v112 = vpack.c.b16 %v92, %v91
  %v113 = vpack.c.b16 %v94, %v93
  %v114 = vpack.c.b16 %v96, %v95
  %v115 = vpack.c.b16 %v98, %v97
  %v116 = vpack.c.b16 %v100, %v99
  %v117 = vpack.c.b16 %v102, %v101
  %v118 = vpack.c.b16 %v104, %v103
  %v119 = vpack.c.b16 %v106, %v105
  %v120 = vpack.c.b16 %v107, %v107
  %vm133 = vcmask 572416
  %v135 = vsel %vm133, %v25, 0
  %vm137 = vcmask 1042432
  %v139 = vsel %vm137, %v120, 0
  %141 = vmatprep.subr.bf16.mxu0 0
  %142 = vmatpush1.bf16.msra.mxu0 %v108
  %143 = vmatprep.subr.bf16.mxu0 0
  %144 = vmatpush1.bf16.msra.mxu0 %v109
  %145 = vmatprep.subr.bf16.mxu0 0
  %146 = vmatpush1.bf16.msra.mxu0 %v110
  %147 = vmatprep.subr.bf16.mxu0 0
  %148 = vmatpush1.bf16.msra.mxu0 %v111
  %149 = vmatprep.subr.bf16.mxu0 0
  %150 = vmatpush1.bf16.msra.mxu0 %v112
  %151 = vmatprep.subr.bf16.mxu0 0
  %152 = vmatpush1.bf16.msra.mxu0 %v113
  %153 = vmatprep.subr.bf16.mxu0 0
  %154 = vmatpush1.bf16.msra.mxu0 %v114
  %155 = vmatprep.subr.bf16.mxu0 0
  %156 = vmatpush1.bf16.msra.mxu0 %v115
  %157 = vmatprep.subr.bf16.mxu0 0
  %158 = vmatpush1.bf16.msra.mxu0 %v116
  %159 = vmatprep.subr.bf16.mxu0 0
  %160 = vmatpush1.bf16.msra.mxu0 %v117
  %161 = vmatprep.subr.bf16.mxu0 0
  %162 = vmatpush1.bf16.msra.mxu0 %v118
  %163 = vmatprep.subr.bf16.mxu0 0
  %164 = vmatpush1.bf16.msra.mxu0 %v119
  %165 = vmatprep.subr.bf16.mxu0 0
  %166 = vmatpush1.bf16.msra.mxu0 %v139
  %167 = vmatprep.subr.bf16.mxu0 0
  %168 = vmatpush1.bf16.msra.mxu0 0
  %169 = vmatprep.subr.bf16.mxu0 0
  %170 = vmatpush1.bf16.msra.mxu0 0
  %171 = vmatprep.subr.bf16.mxu0 0
  %172 = vmatpush1.bf16.msra.mxu0 0
  %173 = vmatprep.mubr.bf16.mxu0 %v135
  %174 = vmatmul.mubr.bf16.gmra.mrb[0].mxu0 %v24
  %v175 = vpop.f32.mrb[0].mxu0
  %v176 = vadd.f32 %v56, %v175
  %v177 = vpop.f32.mrb[0].mxu0
  %v178 = vpop.f32.mrb[0].mxu0
  %v179 = vpop.f32.mrb[0].mxu0
  %180 = vdwg.mxu0
  %v181 = vxor.u32 %v176, 2147483648
  %v182 = vmul.f32 %v181, 1.442695
  %v183 = vpow.pop %v182
  %v184 = vadd.f32 %v183, 1.0
  %v185 = vrcp.pop %v184
  %v186 = vmul.f32 1.0, %v185
  %v187 = vld [vmem:[%s3] sm:$0x1]
  %v189 = vlaneseq
  %v190 = vshrl.u32 %v189, 7
  %v191 = vsub.s32 0, %v190
  %v192 = vrot.slane %v187, %v191
  %v194 = vmul.f32 %v186, %v192
  %vm195 = vcmask 326656
  %v196 = vsel %vm195, %v194, 0.0
  %197 = vadd.xlane.f32.xlu0 %v196
  %v198 = vpop.xlane.xlu0 %197
  %s199 = sld [smem:[#allocation2]]
  %v200 = vstv %s199
  %v201 = vadd.f32 %v198, %v200
  %v202 = vxor.u32 %v201, 2147483648
  %v203 = vmul.f32 %v202, 1.442695
  %v204 = vpow.pop %v203
  %v205 = vadd.f32 %v204, 1.0
  %v206 = vrcp.pop %v205
  %v207 = vmul.f32 1.0, %v206
  %vm208 = vcmask 7168
  %209 = vst.msk [vmem:[%s5] sm:$0xff] %vm208, %v207
  // Predicated region
  $region22: #{tpu_custom_call.1} parent=0 // pred_check
    _
  $region23: #{tpu_custom_call.1} parent=0 // pred_check_branch
    %211 = sbr.rel (0) target = $region25
  $region24: #{tpu_custom_call.1} parent=0 // pred_region
    _
  $region25: #{tpu_custom_call.1} parent=0 // pred_fallthru
    _
  // Predicated region
  $region26: #{tpu_custom_call.1} parent=0 // pred_check
    _
  $region27: #{tpu_custom_call.1} parent=0 // pred_check_branch
    %213 = sbr.rel (0) target = $region29
  $region28: #{tpu_custom_call.1} parent=0 // pred_region
    _
  $region29: #{tpu_custom_call.1} parent=0 // pred_fallthru
    _

</llo_original>
